<compile_context>
chip_gen: v7x
topology: tpu7x:2x2x1
jax: 0.10.0
libtpu: 0.0.40
codegen_flags: <defaults>
</compile_context>

<pallas_src>
import jax
import jax.numpy as jnp
import numpy as np
from jax.experimental import pallas as pl
from jax.experimental.pallas import tpu as pltpu

BN_EPS = 1e-5   # torch BatchNorm1d default
_HALO = 128     # lane-aligned cumsum halo per tile (>= bin_window - 1)


def _round_up(n, m):
    return ((n + m - 1) // m) * m


# ------------------------------------------------ exact head features --------
def _bin_acc_exact(x, num_steps, bin_window_size):
    """Exact torch rolling-buffer bin sums for a short prefix.

    x: (T, 1, D).  Returns (T, num_steps, D) float32.  Only used for the first
    <=128 timesteps (buffer-fill clamping); steady state is done in-kernel.
    """
    T, _, D = x.shape
    step = bin_window_size // num_steps
    seq = jnp.concatenate(
        [jnp.zeros((1, D), jnp.float32), x[:, 0, :].astype(jnp.float32)], axis=0)
    csum = jnp.concatenate(
        [jnp.zeros((1, D), jnp.float32), jnp.cumsum(seq, axis=0)], axis=0)   # (T+2, D)
    t = jnp.arange(T)[:, None]
    i = jnp.arange(num_steps)[None, :]
    start = jnp.maximum(0, t + 2 - bin_window_size)
    end = t + 2
    lo = jnp.minimum(start + step * i, end)
    hi = jnp.minimum(start + step * i + step, end)
    return csum[hi] - csum[lo]                                               # (T, n, D)


# ---------------------------------------------------------------- wrapper ----
def ann3d_forward(x, params, *, num_steps=7, bin_window_size=50, max_seq_tile=8192):
    S, B, D = x.shape
    assert B == 1, "ANNModel3D processes a single stream (batch of 1)"
    W = bin_window_size
    step = W // num_steps
    assert 2 <= W <= _HALO + 1, "bin window must fit inside the 128-column halo"
    assert step * num_steps <= W - 1, "kernel assumes newest sample excluded from bins"

    L1, IN = params["fc1_w"].shape
    L2 = params["fc2_w"].shape[0]
    OUT = params["fc3_w"].shape[0]
    assert IN == D * num_steps
    D_sub = _round_up(D, 8)
    KIN = num_steps * D_sub

    # ---- adaptive sequence tile (big tiles, VMEM-capped, >=2 steps if possible)
    S_ceil = _round_up(max(S, 1), 128)
    bytes_per_col = 4 * (4 * D_sub + 2 * KIN + L1 + L2 + 2 * OUT + 8)   # rough live bytes/col
    vmem_budget = 16 * 1024 * 1024
    tile_cap = max(128, min(max_seq_tile, (vmem_budget // bytes_per_col) // 128 * 128))
    seq_tile = min(tile_cap, S_ceil)
    if seq_tile == S_ceil and S_ceil >= 256:
        seq_tile = _round_up(S_ceil // 2, 128)      # keep both v7x TensorCores busy
    S_pad = _round_up(S_ceil, seq_tile)
    G = S_pad // seq_tile

    # ---- per-channel exclusive prefix sums, channel-major (time on lanes) ----
    xs = x[:, 0, :].astype(jnp.float32)
    xs = jnp.pad(xs, ((0, S_pad - S), (0, D_sub - D)))
    P = jnp.concatenate([jnp.zeros((1, D_sub), jnp.float32),
                         jnp.cumsum(xs, axis=0)[:-1]], axis=0)           # P[m] = sum_{j<m} x[j]
    P_T = P.T                                                            # (D_sub, S_pad)

    # 128 cumsum columns preceding each tile start (zeros before t=0)
    halo_src = jnp.concatenate(
        [jnp.zeros((D_sub, _HALO), jnp.float32), P_T[:, :S_pad - _HALO]], axis=1)
    halo = halo_src.reshape(D_sub, G, seq_tile)[:, :, :_HALO].reshape(D_sub, G * _HALO)

    # exact features for the first min(S,128) steps (rolling-buffer fill phase)
    H = min(S, _HALO)
    acc_head = _bin_acc_exact(x[:H], num_steps, W)                       # (H, n, D)
    head_F = jnp.transpose(acc_head, (1, 2, 0))                          # (n, D, H)
    head_F = jnp.pad(head_F, ((0, 0), (0, D_sub - D), (0, _HALO - H)))
    head_F = head_F.reshape(KIN, _HALO)                                  # row = i*D_sub + d

    # ---- fold eval-mode BatchNorm into the next layer; permute fc1 columns ----
    s1 = params["bn1_gamma"] / jnp.sqrt(params["bn1_var"] + BN_EPS)
    o1 = params["bn1_beta"] - params["bn1_mean"] * s1
    s2 = params["bn2_gamma"] / jnp.sqrt(params["bn2_var"] + BN_EPS)
    o2 = params["bn2_beta"] - params["bn2_mean"] * s2

    w1 = params["fc1_w"].reshape(L1, D, num_steps).transpose(0, 2, 1)    # (L1, n, D)
    w1 = jnp.pad(w1, ((0, 0), (0, 0), (0, D_sub - D))).reshape(L1, KIN)  # bin-major cols
    b1 = params["fc1_b"][:, None]
    w2 = params["fc2_w"] * s1[None, :]                                   # (L2, L1), BN1 folded
    b2 = (params["fc2_b"] + params["fc2_w"] @ o1)[:, None]
    w3 = params["fc3_w"] * s2[None, :]                                   # (OUT, L2), BN2 folded
    b3 = (params["fc3_b"] + params["fc3_w"] @ o2)[:, None]

    base = _HALO - (W - 1)    # local column of P[t - (W-1)] for the tile's first row

    def kernel(halo_ref, pcur_ref, head_ref,
               w1_ref, b1_ref, w2_ref, b2_ref, w3_ref, b3_ref, out_ref):
        # cumsum window covering P[t0-128 .. t0+seq_tile-1]
        C = jnp.concatenate([halo_ref[...], pcur_ref[...]], axis=1)      # (D_sub, TS+128)
        # step-wide window sums: Dsh[:, c] = P[c0+c+step] - P[c0+c]
        Dsh = C[:, step:] - C[:, :-step]
        bins = [Dsh[:, base + step * i: base + step * i + seq_tile]
                for i in range(num_steps)]                               # each (D_sub, TS)
        F = jnp.concatenate(bins, axis=0)                                # (KIN, TS)
        # grid step 0: first 128 timesteps use the exact buffer-fill features
        is_first = pl.program_id(0) == 0
        if seq_tile > _HALO:
            F0 = jnp.where(is_first, head_ref[...], F[:, :_HALO])
            F = jnp.concatenate([F0, F[:, _HALO:]], axis=1)
        else:
            F = jnp.where(is_first, head_ref[...], F)
        h1 = jnp.dot(w1_ref[...], F, preferred_element_type=jnp.float32) + b1_ref[...]
        h1 = jnp.maximum(h1, 0.0)                 # ReLU (dropout = identity in eval)
        h2 = jnp.dot(w2_ref[...], h1, preferred_element_type=jnp.float32) + b2_ref[...]
        h2 = jnp.maximum(h2, 0.0)                 # ReLU (BN folded into next layer)
        out_ref[...] = jnp.dot(w3_ref[...], h2,
                               preferred_element_type=jnp.float32) + b3_ref[...]

    def resident(shape):                          # weights / small constants: same block
        return pl.BlockSpec(shape, lambda k: (0, 0))

    flops = 2 * S_pad * (KIN * L1 + L1 * L2 + L2 * OUT) + S_pad * KIN
    bytes_accessed = 4 * (P_T.size + halo.size + head_F.size + w1.size + w2.size
                          + w3.size + L1 + L2 + OUT + OUT * S_pad)

    out = pl.pallas_call(
        kernel,
        out_shape=jax.ShapeDtypeStruct((OUT, S_pad), jnp.float32),
        grid=(G,),
        in_specs=[
            pl.BlockSpec((D_sub, _HALO), lambda k: (0, k)),       # halo cumsum columns
            pl.BlockSpec((D_sub, seq_tile), lambda k: (0, k)),    # tile cumsum columns
            resident((KIN, _HALO)),                               # exact head features
            resident((L1, KIN)), resident((L1, 1)),
            resident((L2, L1)), resident((L2, 1)),
            resident((OUT, L2)), resident((OUT, 1)),
        ],
        out_specs=pl.BlockSpec((OUT, seq_tile), lambda k: (0, k)),   # lane-dense output
        compiler_params=pltpu.CompilerParams(
            dimension_semantics=("parallel",),
            vmem_limit_bytes=32 * 1024 * 1024),
        cost_estimate=pl.CostEstimate(flops=int(flops), transcendentals=0,
                                      bytes_accessed=int(bytes_accessed)),
    )(halo, P_T, head_F, w1, b1, w2, b2, w3, b3)

    return out[:, :S].T                                              # (S, OUT)


# -------------------------------------------------------- parameter init -----
def init_params(key, input_dim, layer1=32, layer2=48, output_dim=2, num_steps=7):
    keys = jax.random.split(key, 5)
    IN = input_dim * num_steps

    def linear(k, fan_in, fan_out):
        kw, kb = jax.random.split(k)
        bound = 1.0 / np.sqrt(fan_in)
        w = jax.random.uniform(kw, (fan_out, fan_in), jnp.float32, -bound, bound)
        b = jax.random.uniform(kb, (fan_out,), jnp.float32, -bound, bound)
        return w, b

    def bn(k, n, prefix):
        kg, kb, km, kv = jax.random.split(k, 4)
        return {
            f"{prefix}_gamma": jax.random.uniform(kg, (n,), jnp.float32, 0.5, 1.5),
            f"{prefix}_beta": 0.1 * jax.random.normal(kb, (n,), jnp.float32),
            f"{prefix}_mean": 0.1 * jax.random.normal(km, (n,), jnp.float32),
            f"{prefix}_var": jax.random.uniform(kv, (n,), jnp.float32, 0.5, 1.5),
        }

    fc1_w, fc1_b = linear(keys[0], IN, layer1)
    fc2_w, fc2_b = linear(keys[1], layer1, layer2)
    fc3_w, fc3_b = linear(keys[2], layer2, output_dim)
    params = {"fc1_w": fc1_w, "fc1_b": fc1_b,
              "fc2_w": fc2_w, "fc2_b": fc2_b,
              "fc3_w": fc3_w, "fc3_b": fc3_b}
    params.update(bn(keys[3], layer1, "bn1"))
    params.update(bn(keys[4], layer2, "bn2"))
    return params


# -------------------------------------------- literal torch-style reference ---
def reference_forward(x, params, num_steps=7, bin_window_size=50):
    xn = np.asarray(x, np.float32)
    S, _, D = xn.shape
    step_size = bin_window_size // num_steps
    p = {k: np.asarray(v, np.float32) for k, v in params.items()}
    buf = np.zeros((1, D), np.float32)
    preds = []
    for t in range(S):
        buf = np.concatenate([buf, xn[t]], axis=0)
        if buf.shape[0] > bin_window_size:
            buf = buf[1:]
        acc = np.zeros((num_steps, D), np.float32)
        for i in range(num_steps):
            acc[i] = buf[step_size * i:step_size * i + step_size].sum(axis=0)
        feat = acc.T.reshape(1, -1)
        h = np.maximum(feat @ p["fc1_w"].T + p["fc1_b"], 0.0)
        h = (h - p["bn1_mean"]) / np.sqrt(p["bn1_var"] + BN_EPS) * p["bn1_gamma"] + p["bn1_beta"]
        h = np.maximum(h @ p["fc2_w"].T + p["fc2_b"], 0.0)
        h = (h - p["bn2_mean"]) / np.sqrt(p["bn2_var"] + BN_EPS) * p["bn2_gamma"] + p["bn2_beta"]
        h = h @ p["fc3_w"].T + p["fc3_b"]
        preds.append(h[0])
    return np.stack(preds)


if __name__ == "__main__":
    key = jax.random.PRNGKey(0)
    k_x, k_p, k_x2 = jax.random.split(key, 3)
    input_dim = 16
    params = init_params(k_p, input_dim)

    # Long case: exercises the full rolling-window (steady-state) in-kernel
    # binning path across multiple grid tiles.
    seq_len = 320
    x = jax.random.bernoulli(k_x, 0.3, (seq_len, 1, input_dim)).astype(jnp.float32)
    out = jax.block_until_ready(ann3d_forward(x, params))
    assert out.shape == (seq_len, 2)
    ref = reference_forward(np.asarray(x), params)
    np.testing.assert_allclose(np.asarray(out), ref, rtol=1e-3, atol=1e-3)

    # Short case: buffer still filling (< bin_window samples), single tile.
    seq_len2 = 40
    x2 = jax.random.bernoulli(k_x2, 0.3, (seq_len2, 1, input_dim)).astype(jnp.float32)
    out2 = jax.block_until_ready(ann3d_forward(x2, params))
    assert out2.shape == (seq_len2, 2)
    ref2 = reference_forward(np.asarray(x2), params)
    np.testing.assert_allclose(np.asarray(out2), ref2, rtol=1e-3, atol=1e-3)

    print("KERNEL_OK")
</pallas_src>

<mosaic_0001>
module attributes {stable_mosaic.version = 11 : i64} {
  func.func @kernel(%arg0: i32, %arg1: memref<16x128xf32, #tpu.memory_space<vmem>>, %arg2: memref<16x256xf32, #tpu.memory_space<vmem>>, %arg3: memref<112x128xf32, #tpu.memory_space<vmem>>, %arg4: memref<32x112xf32, #tpu.memory_space<vmem>>, %arg5: memref<32x1xf32, #tpu.memory_space<vmem>>, %arg6: memref<48x32xf32, #tpu.memory_space<vmem>>, %arg7: memref<48x1xf32, #tpu.memory_space<vmem>>, %arg8: memref<2x48xf32, #tpu.memory_space<vmem>>, %arg9: memref<2x1xf32, #tpu.memory_space<vmem>>, %arg10: memref<2x256xf32, #tpu.memory_space<vmem>>) attributes {dimension_semantics = [#tpu.dimension_semantics<parallel>], iteration_bounds = array<i64: 2>, scalar_prefetch = 0 : i64, scratch_operands = 0 : i64, tpu.core_type = #tpu.core_type<tc>, window_params = [{transform_indices = @transform_0, window_bounds = array<i64: 16, 128>}, {transform_indices = @transform_1, window_bounds = array<i64: 16, 256>}, {pipeline_mode = #tpu.pipeline_mode<synchronous>, transform_indices = @transform_2, window_bounds = array<i64: 112, 128>}, {pipeline_mode = #tpu.pipeline_mode<synchronous>, transform_indices = @transform_3, window_bounds = array<i64: 32, 112>}, {pipeline_mode = #tpu.pipeline_mode<synchronous>, transform_indices = @transform_4, window_bounds = array<i64: 32, 1>}, {pipeline_mode = #tpu.pipeline_mode<synchronous>, transform_indices = @transform_5, window_bounds = array<i64: 48, 32>}, {pipeline_mode = #tpu.pipeline_mode<synchronous>, transform_indices = @transform_6, window_bounds = array<i64: 48, 1>}, {pipeline_mode = #tpu.pipeline_mode<synchronous>, transform_indices = @transform_7, window_bounds = array<i64: 2, 48>}, {pipeline_mode = #tpu.pipeline_mode<synchronous>, transform_indices = @transform_8, window_bounds = array<i64: 2, 1>}, {transform_indices = @transform_9, window_bounds = array<i64: 2, 256>}]} {
    %c0 = arith.constant 0 : index
    %c0_0 = arith.constant 0 : index
    %0 = vector.load %arg1[%c0, %c0_0] : memref<16x128xf32, #tpu.memory_space<vmem>>, vector<16x128xf32>
    %c0_1 = arith.constant 0 : index
    %c0_2 = arith.constant 0 : index
    %1 = vector.load %arg2[%c0_1, %c0_2] : memref<16x256xf32, #tpu.memory_space<vmem>>, vector<16x256xf32>
    %2 = tpu.concatenate %0, %1 in 1 : vector<16x128xf32>, vector<16x256xf32> -> vector<16x384xf32>
    %3 = vector.extract_strided_slice %2 {offsets = [0, 7], sizes = [16, 377], strides = [1, 1]} : vector<16x384xf32> to vector<16x377xf32>
    %4 = vector.extract_strided_slice %2 {offsets = [0, 0], sizes = [16, 377], strides = [1, 1]} : vector<16x384xf32> to vector<16x377xf32>
    %5 = arith.subf %3, %4 : vector<16x377xf32>
    %6 = vector.extract_strided_slice %5 {offsets = [0, 79], sizes = [16, 256], strides = [1, 1]} : vector<16x377xf32> to vector<16x256xf32>
    %7 = vector.extract_strided_slice %5 {offsets = [0, 86], sizes = [16, 256], strides = [1, 1]} : vector<16x377xf32> to vector<16x256xf32>
    %8 = vector.extract_strided_slice %5 {offsets = [0, 93], sizes = [16, 256], strides = [1, 1]} : vector<16x377xf32> to vector<16x256xf32>
    %9 = vector.extract_strided_slice %5 {offsets = [0, 100], sizes = [16, 256], strides = [1, 1]} : vector<16x377xf32> to vector<16x256xf32>
    %10 = vector.extract_strided_slice %5 {offsets = [0, 107], sizes = [16, 256], strides = [1, 1]} : vector<16x377xf32> to vector<16x256xf32>
    %11 = vector.extract_strided_slice %5 {offsets = [0, 114], sizes = [16, 256], strides = [1, 1]} : vector<16x377xf32> to vector<16x256xf32>
    %12 = vector.extract_strided_slice %5 {offsets = [0, 121], sizes = [16, 256], strides = [1, 1]} : vector<16x377xf32> to vector<16x256xf32>
    %13 = tpu.concatenate %6, %7, %8, %9, %10, %11, %12 in 0 : vector<16x256xf32>, vector<16x256xf32>, vector<16x256xf32>, vector<16x256xf32>, vector<16x256xf32>, vector<16x256xf32>, vector<16x256xf32> -> vector<112x256xf32>
    %c0_i32 = arith.constant 0 : i32
    %14 = arith.cmpi eq, %arg0, %c0_i32 : i32
    %c0_3 = arith.constant 0 : index
    %c0_4 = arith.constant 0 : index
    %15 = vector.load %arg3[%c0_3, %c0_4] : memref<112x128xf32, #tpu.memory_space<vmem>>, vector<112x128xf32>
    %16 = vector.extract_strided_slice %13 {offsets = [0, 0], sizes = [112, 128], strides = [1, 1]} : vector<112x256xf32> to vector<112x128xf32>
    %17 = arith.select %14, %15, %16 : vector<112x128xf32>
    %18 = vector.extract_strided_slice %13 {offsets = [0, 128], sizes = [112, 128], strides = [1, 1]} : vector<112x256xf32> to vector<112x128xf32>
    %19 = tpu.concatenate %17, %18 in 1 : vector<112x128xf32>, vector<112x128xf32> -> vector<112x256xf32>
    %c0_5 = arith.constant 0 : index
    %c0_6 = arith.constant 0 : index
    %20 = vector.load %arg4[%c0_5, %c0_6] : memref<32x112xf32, #tpu.memory_space<vmem>>, vector<32x112xf32>
    %cst = arith.constant dense<0.000000e+00> : vector<32x256xf32>
    %21 = tpu.matmul %20, %19, %cst {dimension_numbers = #tpu.dot_dimension_numbers<[1], [0], [0], [1], [0, 0, 1, 1], [], []>} : vector<32x112xf32>, vector<112x256xf32>, vector<32x256xf32> -> vector<32x256xf32>
    %c0_7 = arith.constant 0 : index
    %c0_8 = arith.constant 0 : index
    %22 = vector.load %arg5[%c0_7, %c0_8] : memref<32x1xf32, #tpu.memory_space<vmem>>, vector<32x1xf32>
    %23 = vector.broadcast %22 : vector<32x1xf32> to vector<32x256xf32>
    %24 = arith.addf %21, %23 : vector<32x256xf32>
    %cst_9 = arith.constant 0.000000e+00 : f32
    %25 = vector.broadcast %cst_9 : f32 to vector<32x256xf32>
    %26 = arith.maximumf %24, %25 : vector<32x256xf32>
    %c0_10 = arith.constant 0 : index
    %c0_11 = arith.constant 0 : index
    %27 = vector.load %arg6[%c0_10, %c0_11] : memref<48x32xf32, #tpu.memory_space<vmem>>, vector<48x32xf32>
    %cst_12 = arith.constant dense<0.000000e+00> : vector<48x256xf32>
    %28 = tpu.matmul %27, %26, %cst_12 {dimension_numbers = #tpu.dot_dimension_numbers<[1], [0], [0], [1], [0, 0, 1, 1], [], []>} : vector<48x32xf32>, vector<32x256xf32>, vector<48x256xf32> -> vector<48x256xf32>
    %c0_13 = arith.constant 0 : index
    %c0_14 = arith.constant 0 : index
    %29 = vector.load %arg7[%c0_13, %c0_14] : memref<48x1xf32, #tpu.memory_space<vmem>>, vector<48x1xf32>
    %30 = vector.broadcast %29 : vector<48x1xf32> to vector<48x256xf32>
    %31 = arith.addf %28, %30 : vector<48x256xf32>
    %cst_15 = arith.constant 0.000000e+00 : f32
    %32 = vector.broadcast %cst_15 : f32 to vector<48x256xf32>
    %33 = arith.maximumf %31, %32 : vector<48x256xf32>
    %c0_16 = arith.constant 0 : index
    %c0_17 = arith.constant 0 : index
    %34 = vector.load %arg8[%c0_16, %c0_17] : memref<2x48xf32, #tpu.memory_space<vmem>>, vector<2x48xf32>
    %cst_18 = arith.constant dense<0.000000e+00> : vector<2x256xf32>
    %35 = tpu.matmul %34, %33, %cst_18 {dimension_numbers = #tpu.dot_dimension_numbers<[1], [0], [0], [1], [0, 0, 1, 1], [], []>} : vector<2x48xf32>, vector<48x256xf32>, vector<2x256xf32> -> vector<2x256xf32>
    %c0_19 = arith.constant 0 : index
    %c0_20 = arith.constant 0 : index
    %36 = vector.load %arg9[%c0_19, %c0_20] : memref<2x1xf32, #tpu.memory_space<vmem>>, vector<2x1xf32>
    %37 = vector.broadcast %36 : vector<2x1xf32> to vector<2x256xf32>
    %38 = arith.addf %35, %37 : vector<2x256xf32>
    %c0_21 = arith.constant 0 : index
    %c0_22 = arith.constant 0 : index
    %39 = vector.load %arg10[%c0_21, %c0_22] : memref<2x256xf32, #tpu.memory_space<vmem>>, vector<2x256xf32>
    tpu.vector_store %arg10[%c0_21, %c0_22], %38 {strides = array<i32>} : memref<2x256xf32, #tpu.memory_space<vmem>>, vector<2x256xf32>,
    return
  }
  func.func @transform_0(%arg0: i32) -> (i32, i32) {
    %c0_i32 = arith.constant 0 : i32
    %c0_i32_0 = arith.constant 0 : i32
    return %c0_i32, %arg0 : i32, i32
  }
  func.func @transform_1(%arg0: i32) -> (i32, i32) {
    %c0_i32 = arith.constant 0 : i32
    %c0_i32_0 = arith.constant 0 : i32
    return %c0_i32, %arg0 : i32, i32
  }
  func.func @transform_2(%arg0: i32) -> (i32, i32) {
    %c0_i32 = arith.constant 0 : i32
    %c0_i32_0 = arith.constant 0 : i32
    %c0_i32_1 = arith.constant 0 : i32
    return %c0_i32, %c0_i32_0 : i32, i32
  }
  func.func @transform_3(%arg0: i32) -> (i32, i32) {
    %c0_i32 = arith.constant 0 : i32
    %c0_i32_0 = arith.constant 0 : i32
    %c0_i32_1 = arith.constant 0 : i32
    return %c0_i32, %c0_i32_0 : i32, i32
  }
  func.func @transform_4(%arg0: i32) -> (i32, i32) {
    %c0_i32 = arith.constant 0 : i32
    %c0_i32_0 = arith.constant 0 : i32
    %c0_i32_1 = arith.constant 0 : i32
    return %c0_i32, %c0_i32_0 : i32, i32
  }
  func.func @transform_5(%arg0: i32) -> (i32, i32) {
    %c0_i32 = arith.constant 0 : i32
    %c0_i32_0 = arith.constant 0 : i32
    %c0_i32_1 = arith.constant 0 : i32
    return %c0_i32, %c0_i32_0 : i32, i32
  }
  func.func @transform_6(%arg0: i32) -> (i32, i32) {
    %c0_i32 = arith.constant 0 : i32
    %c0_i32_0 = arith.constant 0 : i32
    %c0_i32_1 = arith.constant 0 : i32
    return %c0_i32, %c0_i32_0 : i32, i32
  }
  func.func @transform_7(%arg0: i32) -> (i32, i32) {
    %c0_i32 = arith.constant 0 : i32
    %c0_i32_0 = arith.constant 0 : i32
    %c0_i32_1 = arith.constant 0 : i32
    return %c0_i32, %c0_i32_0 : i32, i32
  }
  func.func @transform_8(%arg0: i32) -> (i32, i32) {
    %c0_i32 = arith.constant 0 : i32
    %c0_i32_0 = arith.constant 0 : i32
    %c0_i32_1 = arith.constant 0 : i32
    return %c0_i32, %c0_i32_0 : i32, i32
  }
  func.func @transform_9(%arg0: i32) -> (i32, i32) {
    %c0_i32 = arith.constant 0 : i32
    %c0_i32_0 = arith.constant 0 : i32
    return %c0_i32, %arg0 : i32, i32
  }
}

</mosaic_0001>

<llo_original>
// kernel: tpu_custom_call.1
$region0: #{tpu_custom_call.1}
  #allocation0 [shape = 'u32[]', space=smem, size = 0x4, offset = 0x4, fixed_abs, tag = 'smem constant byte address 0x4 - core index']
  #allocation1 [shape = 'u32[144,128]{1,0:T(1,128)}', space=vmem, size = 0x12000, scoped, tag = 'internal scratch']
  %s0 = inlined_call_operand.vmem [shape: f32[16,256], index: 0, kind: input, shape index: {}]
  %s1 = inlined_call_operand.hbm [shape: f32[16,512], index: 1, kind: input, shape index: {}]
  %s2 = inlined_call_operand.vmem [shape: f32[112,128], index: 2, kind: input, shape index: {}]
  %s3 = inlined_call_operand.vmem [shape: f32[32,112], index: 3, kind: input, shape index: {}]
  %s4 = inlined_call_operand.vmem [shape: f32[32,1], index: 4, kind: input, shape index: {}]
  %s5 = inlined_call_operand.vmem [shape: f32[48,32], index: 5, kind: input, shape index: {}]
  %s6 = inlined_call_operand.vmem [shape: f32[48,1], index: 6, kind: input, shape index: {}]
  %s7 = inlined_call_operand.vmem [shape: f32[2,48], index: 7, kind: input, shape index: {}]
  %s8 = inlined_call_operand.vmem [shape: f32[2,1], index: 8, kind: input, shape index: {}]
  %s9 = inlined_call_operand.hbm [shape: f32[2,512], index: 9, kind: output, shape index: {}]
  %s10 = sld [smem:[#allocation0]]
  $region111: #{tpu_custom_call.1} parent=0
    _
  %s12 = ssub.s32 1, %s10
  %s13 = scalar_select 0, %s12, %s10
  $region1: #{tpu_custom_call.1} parent=0
    #allocation2 [shape = 'u8[16384]{0}', space=vmem, size = 0x4000, scoped, tag = 'input window, operand 0']
    #allocation3 [shape = 'u8[32768]{0}', space=vmem, size = 0x8000, scoped, tag = 'input window, operand 1']
    #allocation4 [shape = 's32[2]{0}', space=sflag, size = 0x8, scoped, tag = 'scoped memory for tpu_custom_call.1']
    #allocation5 [shape = 's32[2]{0}', space=sflag, size = 0x8, scoped, tag = 'scoped memory for tpu_custom_call.1']
    #allocation6 [shape = 'u8[4096]{0}', space=vmem, size = 0x1000, scoped, tag = 'output window, operand 0']
    %14 = vsyncpa [#allocation4], 0
    %s15 = scalar_lea.sflag [#allocation4], 1
    %16 = vsyncpa %s15, 0
    %17 = vsyncpa [#allocation5], 0
    %s18 = scalar_lea.sflag [#allocation5], 1
    %19 = vsyncpa %s18, 0
    loop: start=0, step=1, limit=4
    $region2: #{tpu_custom_call.1} parent=1 // loop_pre_header
      _
    $region3: #{tpu_custom_call.1} parent=1 // loop_header
      %s21 = sphi 0, %s25
      %p22 = scmp.ge.s32.totalorder %s21, 4
      %s31 = sphi 0, %s33
      %s34 = sphi 0, %s31
      %s35 = sphi 0, %s34
      %s51 = sphi 0, %s35
      %s57 = sphi 0, %s59
      %s60 = sphi 0, %s57
      %s61 = sphi 0, %s60
      %s77 = sphi 0, %s61
      %s81 = sphi 0, %s81
      %s83 = sphi 0, %s81
      %s84 = sphi 0, %s83
      %s98 = sphi 0, %s84
      %s102 = sphi 0, %s102
      %s104 = sphi 0, %s102
      %s105 = sphi 0, %s104
      %s119 = sphi 0, %s105
      %s123 = sphi 0, %s123
      %s125 = sphi 0, %s123
      %s126 = sphi 0, %s125
      %s140 = sphi 0, %s126
      %s144 = sphi 0, %s144
      %s146 = sphi 0, %s144
      %s147 = sphi 0, %s146
      %s161 = sphi 0, %s147
      %s165 = sphi 0, %s165
      %s167 = sphi 0, %s165
      %s168 = sphi 0, %s167
      %s182 = sphi 0, %s168
      %s186 = sphi 0, %s186
      %s188 = sphi 0, %s186
      %s189 = sphi 0, %s188
      %s203 = sphi 0, %s189
      %s207 = sphi 0, %s207
      %s209 = sphi 0, %s207
      %s210 = sphi 0, %s209
      %s224 = sphi 0, %s210
      %s230 = sphi 0, %s232
      %s233 = sphi 0, %s230
      %s234 = sphi 0, %s233
      %s250 = sphi 0, %s234
    $region4: #{tpu_custom_call.1} parent=1 // loop_header_branch
      %24 = sbr.rel (%p22) target = $region8
    $region5: #{tpu_custom_call.1} parent=1 // loop_body
      %s26 = ssub.s32 %s21, 1
      %s27 = ssub.s32 %s21, 2
      %s28 = sadd.s32 %s21, 1
      %s29 = ssub.s32 %s21, %s28
      %p30 = scmp.eq.s32.totalorder %s29, 0
      %s32 = sadd.s32 %s31, 1
      %s33 = scalar_select %p30, %s31, %s32
      %p36 = pneg %p30
      %p37 = scmp.eq.s32.totalorder %s21, 1
      %p38 = por %p36, %p37
      %p39 = scmp.ne.s32.totalorder %s31, %s34
      %p40 = scmp.eq.s32.totalorder %s21, 0
      %p41 = por %p39, %p40
      %p42 = scmp.ne.s32.totalorder %s31, %s34
      %p43 = scmp.eq.s32.totalorder %s26, 1
      %p44 = por %p42, %p43
      %p45 = scmp.ne.s32.totalorder %s34, %s35
      %p46 = scmp.eq.s32.totalorder %s26, 0
      %p47 = por %p45, %p46
      %p48 = scmp.ne.s32.totalorder %s34, %s35
      %p49 = scmp.eq.s32.totalorder %s27, 1
      %p50 = por %p48, %p49
      %p52 = scmp.ne.s32.totalorder %s35, %s51
      %p53 = scmp.eq.s32.totalorder %s27, 0
      %p54 = por %p52, %p53
      %s55 = ssub.s32 %s21, %s28
      %p56 = scmp.eq.s32.totalorder %s55, 0
      %s58 = sadd.s32 %s57, 1
      %s59 = scalar_select %p56, %s57, %s58
      %p62 = pneg %p56
      %p63 = scmp.eq.s32.totalorder %s21, 1
      %p64 = por %p62, %p63
      %p65 = scmp.ne.s32.totalorder %s57, %s60
      %p66 = scmp.eq.s32.totalorder %s21, 0
      %p67 = por %p65, %p66
      %p68 = scmp.ne.s32.totalorder %s57, %s60
      %p69 = scmp.eq.s32.totalorder %s26, 1
      %p70 = por %p68, %p69
      %p71 = scmp.ne.s32.totalorder %s60, %s61
      %p72 = scmp.eq.s32.totalorder %s26, 0
      %p73 = por %p71, %p72
      %p74 = scmp.ne.s32.totalorder %s60, %s61
      %p75 = scmp.eq.s32.totalorder %s27, 1
      %p76 = por %p74, %p75
      %p78 = scmp.ne.s32.totalorder %s61, %s77
      %p79 = scmp.eq.s32.totalorder %s27, 0
      %p80 = por %p78, %p79
      %s82 = sadd.s32 %s81, 1
      %p85 = scmp.eq.s32.totalorder %s21, 1
      %p86 = scmp.ne.s32.totalorder %s81, %s83
      %p87 = scmp.eq.s32.totalorder %s21, 0
      %p88 = por %p86, %p87
      %p89 = scmp.ne.s32.totalorder %s81, %s83
      %p90 = scmp.eq.s32.totalorder %s26, 1
      %p91 = por %p89, %p90
      %p92 = scmp.ne.s32.totalorder %s83, %s84
      %p93 = scmp.eq.s32.totalorder %s26, 0
      %p94 = por %p92, %p93
      %p95 = scmp.ne.s32.totalorder %s83, %s84
      %p96 = scmp.eq.s32.totalorder %s27, 1
      %p97 = por %p95, %p96
      %p99 = scmp.ne.s32.totalorder %s84, %s98
      %p100 = scmp.eq.s32.totalorder %s27, 0
      %p101 = por %p99, %p100
      %s103 = sadd.s32 %s102, 1
      %p106 = scmp.eq.s32.totalorder %s21, 1
      %p107 = scmp.ne.s32.totalorder %s102, %s104
      %p108 = scmp.eq.s32.totalorder %s21, 0
      %p109 = por %p107, %p108
      %p110 = scmp.ne.s32.totalorder %s102, %s104
      %p111 = scmp.eq.s32.totalorder %s26, 1
      %p112 = por %p110, %p111
      %p113 = scmp.ne.s32.totalorder %s104, %s105
      %p114 = scmp.eq.s32.totalorder %s26, 0
      %p115 = por %p113, %p114
      %p116 = scmp.ne.s32.totalorder %s104, %s105
      %p117 = scmp.eq.s32.totalorder %s27, 1
      %p118 = por %p116, %p117
      %p120 = scmp.ne.s32.totalorder %s105, %s119
      %p121 = scmp.eq.s32.totalorder %s27, 0
      %p122 = por %p120, %p121
      %s124 = sadd.s32 %s123, 1
      %p127 = scmp.eq.s32.totalorder %s21, 1
      %p128 = scmp.ne.s32.totalorder %s123, %s125
      %p129 = scmp.eq.s32.totalorder %s21, 0
      %p130 = por %p128, %p129
      %p131 = scmp.ne.s32.totalorder %s123, %s125
      %p132 = scmp.eq.s32.totalorder %s26, 1
      %p133 = por %p131, %p132
      %p134 = scmp.ne.s32.totalorder %s125, %s126
      %p135 = scmp.eq.s32.totalorder %s26, 0
      %p136 = por %p134, %p135
      %p137 = scmp.ne.s32.totalorder %s125, %s126
      %p138 = scmp.eq.s32.totalorder %s27, 1
      %p139 = por %p137, %p138
      %p141 = scmp.ne.s32.totalorder %s126, %s140
      %p142 = scmp.eq.s32.totalorder %s27, 0
      %p143 = por %p141, %p142
      %s145 = sadd.s32 %s144, 1
      %p148 = scmp.eq.s32.totalorder %s21, 1
      %p149 = scmp.ne.s32.totalorder %s144, %s146
      %p150 = scmp.eq.s32.totalorder %s21, 0
      %p151 = por %p149, %p150
      %p152 = scmp.ne.s32.totalorder %s144, %s146
      %p153 = scmp.eq.s32.totalorder %s26, 1
      %p154 = por %p152, %p153
      %p155 = scmp.ne.s32.totalorder %s146, %s147
      %p156 = scmp.eq.s32.totalorder %s26, 0
      %p157 = por %p155, %p156
      %p158 = scmp.ne.s32.totalorder %s146, %s147
      %p159 = scmp.eq.s32.totalorder %s27, 1
      %p160 = por %p158, %p159
      %p162 = scmp.ne.s32.totalorder %s147, %s161
      %p163 = scmp.eq.s32.totalorder %s27, 0
      %p164 = por %p162, %p163
      %s166 = sadd.s32 %s165, 1
      %p169 = scmp.eq.s32.totalorder %s21, 1
      %p170 = scmp.ne.s32.totalorder %s165, %s167
      %p171 = scmp.eq.s32.totalorder %s21, 0
      %p172 = por %p170, %p171
      %p173 = scmp.ne.s32.totalorder %s165, %s167
      %p174 = scmp.eq.s32.totalorder %s26, 1
      %p175 = por %p173, %p174
      %p176 = scmp.ne.s32.totalorder %s167, %s168
      %p177 = scmp.eq.s32.totalorder %s26, 0
      %p178 = por %p176, %p177
      %p179 = scmp.ne.s32.totalorder %s167, %s168
      %p180 = scmp.eq.s32.totalorder %s27, 1
      %p181 = por %p179, %p180
      %p183 = scmp.ne.s32.totalorder %s168, %s182
      %p184 = scmp.eq.s32.totalorder %s27, 0
      %p185 = por %p183, %p184
      %s187 = sadd.s32 %s186, 1
      %p190 = scmp.eq.s32.totalorder %s21, 1
      %p191 = scmp.ne.s32.totalorder %s186, %s188
      %p192 = scmp.eq.s32.totalorder %s21, 0
      %p193 = por %p191, %p192
      %p194 = scmp.ne.s32.totalorder %s186, %s188
      %p195 = scmp.eq.s32.totalorder %s26, 1
      %p196 = por %p194, %p195
      %p197 = scmp.ne.s32.totalorder %s188, %s189
      %p198 = scmp.eq.s32.totalorder %s26, 0
      %p199 = por %p197, %p198
      %p200 = scmp.ne.s32.totalorder %s188, %s189
      %p201 = scmp.eq.s32.totalorder %s27, 1
      %p202 = por %p200, %p201
      %p204 = scmp.ne.s32.totalorder %s189, %s203
      %p205 = scmp.eq.s32.totalorder %s27, 0
      %p206 = por %p204, %p205
      %s208 = sadd.s32 %s207, 1
      %p211 = scmp.eq.s32.totalorder %s21, 1
      %p212 = scmp.ne.s32.totalorder %s207, %s209
      %p213 = scmp.eq.s32.totalorder %s21, 0
      %p214 = por %p212, %p213
      %p215 = scmp.ne.s32.totalorder %s207, %s209
      %p216 = scmp.eq.s32.totalorder %s26, 1
      %p217 = por %p215, %p216
      %p218 = scmp.ne.s32.totalorder %s209, %s210
      %p219 = scmp.eq.s32.totalorder %s26, 0
      %p220 = por %p218, %p219
      %p221 = scmp.ne.s32.totalorder %s209, %s210
      %p222 = scmp.eq.s32.totalorder %s27, 1
      %p223 = por %p221, %p222
      %p225 = scmp.ne.s32.totalorder %s210, %s224
      %p226 = scmp.eq.s32.totalorder %s27, 0
      %p227 = por %p225, %p226
      %s228 = ssub.s32 %s21, %s28
      %p229 = scmp.eq.s32.totalorder %s228, 0
      %s231 = sadd.s32 %s230, 1
      %s232 = scalar_select %p229, %s230, %s231
      %p235 = pneg %p229
      %p236 = scmp.eq.s32.totalorder %s21, 1
      %p237 = por %p235, %p236
      %p238 = scmp.ne.s32.totalorder %s230, %s233
      %p239 = scmp.eq.s32.totalorder %s21, 0
      %p240 = por %p238, %p239
      %p241 = scmp.ne.s32.totalorder %s230, %s233
      %p242 = scmp.eq.s32.totalorder %s26, 1
      %p243 = por %p241, %p242
      %p244 = scmp.ne.s32.totalorder %s233, %s234
      %p245 = scmp.eq.s32.totalorder %s26, 0
      %p246 = por %p244, %p245
      %p247 = scmp.ne.s32.totalorder %s233, %s234
      %p248 = scmp.eq.s32.totalorder %s27, 1
      %p249 = por %p247, %p248
      %p251 = scmp.ne.s32.totalorder %s234, %s250
      %p252 = scmp.eq.s32.totalorder %s27, 0
      %p253 = por %p251, %p252
      %p254 = scmp.le.s32.totalorder 1, %s21
      %p255 = scmp.lt.s32.totalorder %s21, 3
      %p256 = pnand %p254, %p255
      %p257 = pneg %p256
      // Predicated region
      $region9: #{tpu_custom_call.1} parent=5 // pred_check
        _
      $region10: #{tpu_custom_call.1} parent=5 // pred_check_branch
        %259 = sbr.rel (%p256) target = $region12
      $region11: #{tpu_custom_call.1} parent=5 // pred_region
        %s260 = ssub.s32 %s21, 1
        // Predicated region
        $region13: #{tpu_custom_call.1} parent=11 // pred_check
          %p261 = pneg %p94
        $region14: #{tpu_custom_call.1} parent=11 // pred_check_branch
          %263 = sbr.rel (%p261) target = $region16
        $region15: #{tpu_custom_call.1} parent=11 // pred_region
          _
        $region16: #{tpu_custom_call.1} parent=11 // pred_fallthru
          _
        // Predicated region
        $region17: #{tpu_custom_call.1} parent=11 // pred_check
          %p264 = pneg %p115
        $region18: #{tpu_custom_call.1} parent=11 // pred_check_branch
          %266 = sbr.rel (%p264) target = $region20
        $region19: #{tpu_custom_call.1} parent=11 // pred_region
          _
        $region20: #{tpu_custom_call.1} parent=11 // pred_fallthru
          _
        // Predicated region
        $region21: #{tpu_custom_call.1} parent=11 // pred_check
          %p267 = pneg %p136
        $region22: #{tpu_custom_call.1} parent=11 // pred_check_branch
          %269 = sbr.rel (%p267) target = $region24
        $region23: #{tpu_custom_call.1} parent=11 // pred_region
          _
        $region24: #{tpu_custom_call.1} parent=11 // pred_fallthru
          _
        // Predicated region
        $region25: #{tpu_custom_call.1} parent=11 // pred_check
          %p270 = pneg %p157
        $region26: #{tpu_custom_call.1} parent=11 // pred_check_branch
          %272 = sbr.rel (%p270) target = $region28
        $region27: #{tpu_custom_call.1} parent=11 // pred_region
          _
        $region28: #{tpu_custom_call.1} parent=11 // pred_fallthru
          _
        // Predicated region
        $region29: #{tpu_custom_call.1} parent=11 // pred_check
          %p273 = pneg %p178
        $region30: #{tpu_custom_call.1} parent=11 // pred_check_branch
          %275 = sbr.rel (%p273) target = $region32
        $region31: #{tpu_custom_call.1} parent=11 // pred_region
          _
        $region32: #{tpu_custom_call.1} parent=11 // pred_fallthru
          _
        // Predicated region
        $region33: #{tpu_custom_call.1} parent=11 // pred_check
          %p276 = pneg %p199
        $region34: #{tpu_custom_call.1} parent=11 // pred_check_branch
          %278 = sbr.rel (%p276) target = $region36
        $region35: #{tpu_custom_call.1} parent=11 // pred_region
          _
        $region36: #{tpu_custom_call.1} parent=11 // pred_fallthru
          _
        // Predicated region
        $region37: #{tpu_custom_call.1} parent=11 // pred_check
          %p279 = pneg %p220
        $region38: #{tpu_custom_call.1} parent=11 // pred_check_branch
          %281 = sbr.rel (%p279) target = $region40
        $region39: #{tpu_custom_call.1} parent=11 // pred_region
          _
        $region40: #{tpu_custom_call.1} parent=11 // pred_fallthru
          _
      $region12: #{tpu_custom_call.1} parent=5 // pred_fallthru
        _
      %p282 = scmp.lt.s32.totalorder %s21, 2
      // Predicated region
      $region41: #{tpu_custom_call.1} parent=5 // pred_check
        %p283 = pneg %p282
      $region42: #{tpu_custom_call.1} parent=5 // pred_check_branch
        %285 = sbr.rel (%p283) target = $region44
      $region43: #{tpu_custom_call.1} parent=5 // pred_region
        // Predicated region
        $region45: #{tpu_custom_call.1} parent=43 // pred_check
          %p286 = pneg %p41
        $region46: #{tpu_custom_call.1} parent=43 // pred_check_branch
          %288 = sbr.rel (%p286) target = $region48
        $region47: #{tpu_custom_call.1} parent=43 // pred_region
          %s289 = sand.u32 %s31, 1
          %s290 = sand.u32 %s31, 1
          %s291 = smul.addr %s290, 16
          %s292 = scalar_lea.vmem [#allocation2], %s291
          %s293 = smul.addr %s21, 8
          %s294 = scalar_lea.vmem %s0, %s293
          // Predicated region
          $region49: #{tpu_custom_call.1} parent=47 // pred_check
            _
          $region50: #{tpu_custom_call.1} parent=47 // pred_check_branch
            %296 = sbr.rel (0) target = $region52
          $region51: #{tpu_custom_call.1} parent=47 // pred_region
            // Predicated region
            $region53: #{tpu_custom_call.1} parent=51 // pred_check
              _
            $region54: #{tpu_custom_call.1} parent=51 // pred_check_branch
              %298 = sbr.rel (0) target = $region56
            $region55: #{tpu_custom_call.1} parent=51 // pred_region
              // Predicated region
              $region68: #{tpu_custom_call.1} parent=55 // pred_check
                _
              $region69: #{tpu_custom_call.1} parent=55 // pred_check_branch
                %315 = sbr.rel (0) target = $region71
              $region70: #{tpu_custom_call.1} parent=55 // pred_region
                loop: start=0, step=1, limit=1
                $region72: #{tpu_custom_call.1} parent=70 // loop_pre_header
                  _
                $region73: #{tpu_custom_call.1} parent=70 // loop_header
                  %s317 = sphi 0, %s321
                  %p318 = scmp.ge.s32.totalorder %s317, 1
                  %s322 = sphi %s294, %s294
                  %s323 = sphi %s292, %s292
                $region74: #{tpu_custom_call.1} parent=70 // loop_header_branch
                  %320 = sbr.rel (%p318) target = $region78
                $region75: #{tpu_custom_call.1} parent=70 // loop_body
                  %v324 = vld [vmem:[%s322] sm:$0xff]
                  %325 = vst [vmem:[%s323] sm:$0xff] %v324
                  %v326 = vld [vmem:[%s322 + $0x10] sm:$0xff]
                  %327 = vst [vmem:[%s323 + $0x8] sm:$0xff] %v326
                $region76: #{tpu_custom_call.1} parent=70 // loop_footer
                  %s321 = sadd.s32 1, %s317
                $region77: #{tpu_custom_call.1} parent=70 // loop_footer_branch
                  %316 = sbr.rel target = $region73
                $region78: #{tpu_custom_call.1} parent=70 // loop_exit
                  _
              $region71: #{tpu_custom_call.1} parent=55 // pred_fallthru
                _
              // Predicated region
              $region79: #{tpu_custom_call.1} parent=55 // pred_check
                _
              $region80: #{tpu_custom_call.1} parent=55 // pred_check_branch
                %329 = sbr.rel target = $region82
              $region81: #{tpu_custom_call.1} parent=55 // pred_region
                _
              $region82: #{tpu_custom_call.1} parent=55 // pred_fallthru
                _
            $region56: #{tpu_custom_call.1} parent=51 // pred_fallthru
              _
            // Predicated region
            $region57: #{tpu_custom_call.1} parent=51 // pred_check
              _
            $region58: #{tpu_custom_call.1} parent=51 // pred_check_branch
              %300 = sbr.rel target = $region60
            $region59: #{tpu_custom_call.1} parent=51 // pred_region
              loop: start=0, step=1, limit=1
              $region61: #{tpu_custom_call.1} parent=59 // loop_pre_header
                _
              $region62: #{tpu_custom_call.1} parent=59 // loop_header
                %s303 = sphi 0, %s307
                %p304 = scmp.ge.s32.totalorder %s303, 1
                %s308 = sphi %s294, %s294
                %s309 = sphi %s292, %s292
              $region63: #{tpu_custom_call.1} parent=59 // loop_header_branch
                %306 = sbr.rel (%p304) target = $region67
              $region64: #{tpu_custom_call.1} parent=59 // loop_body
                %v310 = vld [vmem:[%s308] sm:$0xff]
                %311 = vst [vmem:[%s309] sm:$0xff] %v310
                %v312 = vld [vmem:[%s308 + $0x10] sm:$0xff]
                %313 = vst [vmem:[%s309 + $0x8] sm:$0xff] %v312
              $region65: #{tpu_custom_call.1} parent=59 // loop_footer
                %s307 = sadd.s32 1, %s303
              $region66: #{tpu_custom_call.1} parent=59 // loop_footer_branch
                %302 = sbr.rel target = $region62
              $region67: #{tpu_custom_call.1} parent=59 // loop_exit
                _
            $region60: #{tpu_custom_call.1} parent=51 // pred_fallthru
              _
          $region52: #{tpu_custom_call.1} parent=47 // pred_fallthru
            _
          %330 = vnop
        $region48: #{tpu_custom_call.1} parent=43 // pred_fallthru
          _
        // Predicated region
        $region83: #{tpu_custom_call.1} parent=43 // pred_check
          %p331 = pneg %p67
        $region84: #{tpu_custom_call.1} parent=43 // pred_check_branch
          %333 = sbr.rel (%p331) target = $region86
        $region85: #{tpu_custom_call.1} parent=43 // pred_region
          %s334 = sand.u32 %s57, 1
          %s335 = scalar_lea.sflag [#allocation4], %s334
          %s336 = sand.u32 %s57, 1
          %s337 = smul.addr %s336, 32
          %s338 = scalar_lea.vmem [#allocation3], %s337
          %s339 = smul.u32 2, %s21
          %s341 = ssub.s32 512, 512
          %342 = vsyncadd %s335, %s341
          %s343 = smul.addr %s339, 128
          %s344 = scalar_lea.hbm %s1, %s343
          %s345 = sshll.u32 %s338, 4
          %s346 = int_to_ptr.vmem [resolvable:$true] %s345
          %351 = dma.hbm_to_vmem [thread:$0]  %s344, 512, %s346, %s335, 512, 256, 16
        $region86: #{tpu_custom_call.1} parent=43 // pred_fallthru
          _
      $region44: #{tpu_custom_call.1} parent=5 // pred_fallthru
        _
      %p352 = scmp.le.s32.totalorder 1, %s21
      %p353 = scmp.lt.s32.totalorder %s21, 3
      %p354 = pnand %p352, %p353
      %p355 = pneg %p354
      // Predicated region
      $region87: #{tpu_custom_call.1} parent=5 // pred_check
        _
      $region88: #{tpu_custom_call.1} parent=5 // pred_check_branch
        %357 = sbr.rel (%p354) target = $region90
      $region89: #{tpu_custom_call.1} parent=5 // pred_region
        %s358 = ssub.s32 %s21, 1
        %s359 = sand.u32 %s34, 1
        %s360 = sand.u32 %s34, 1
        %s361 = smul.addr %s360, 16
        %s362 = scalar_lea.vmem [#allocation2], %s361
        // Predicated region
        $region91: #{tpu_custom_call.1} parent=89 // pred_check
          %p363 = pneg %p47
        $region92: #{tpu_custom_call.1} parent=89 // pred_check_branch
          %365 = sbr.rel (%p363) target = $region94
        $region93: #{tpu_custom_call.1} parent=89 // pred_region
          _
        $region94: #{tpu_custom_call.1} parent=89 // pred_fallthru
          _
        %s366 = sand.u32 %s60, 1
        %s367 = scalar_lea.sflag [#allocation4], %s366
        %s368 = sand.u32 %s60, 1
        %s369 = smul.addr %s368, 32
        %s370 = scalar_lea.vmem [#allocation3], %s369
        // Predicated region
        $region95: #{tpu_custom_call.1} parent=89 // pred_check
          %p371 = pneg %p73
        $region96: #{tpu_custom_call.1} parent=89 // pred_check_branch
          %373 = sbr.rel (%p371) target = $region98
        $region97: #{tpu_custom_call.1} parent=89 // pred_region
          %374 = dma.done %s367, 512
        $region98: #{tpu_custom_call.1} parent=89 // pred_fallthru
          _
        %s375 = sand.u32 %s34, 1
        %s376 = sand.u32 %s34, 1
        %s377 = smul.addr %s376, 16
        %s378 = scalar_lea.vmem [#allocation2], %s377
        %p379 = pneg %p47
        %p380 = pneg %p44
        %s381 = sand.u32 %s60, 1
        %s382 = scalar_lea.sflag [#allocation4], %s381
        %s383 = sand.u32 %s60, 1
        %s384 = smul.addr %s383, 32
        %s385 = scalar_lea.vmem [#allocation3], %s384
        %p386 = pneg %p73
        %p387 = pneg %p70
        %p388 = pneg %p94
        %p389 = pneg %p91
        %p390 = pneg %p115
        %p391 = pneg %p112
        %p392 = pneg %p136
        %p393 = pneg %p133
        %p394 = pneg %p157
        %p395 = pneg %p154
        %p396 = pneg %p178
        %p397 = pneg %p175
        %p398 = pneg %p199
        %p399 = pneg %p196
        %p400 = pneg %p220
        %p401 = pneg %p217
        %p402 = pneg %p246
        %p403 = pneg %p243
        %s404 = sand.u32 %s233, 1
        %s405 = scalar_lea.sflag [#allocation5], %s404
        %s406 = sand.u32 %s233, 1
        %s407 = smul.addr %s406, 4
        %s408 = scalar_lea.vmem [#allocation6], %s407
        %s409 = smul.u32 2, %s26
        %s410 = smul.u32 2, %s26
        %v411 = vld [vmem:[%s362] sm:$0xff]
        %v412 = vld [vmem:[%s362 + $0x8] sm:$0xff]
        %v413 = vld [vmem:[%s370] sm:$0xff]
        %v414 = vld [vmem:[%s370 + $0x8] sm:$0xff]
        %v415 = vld [vmem:[%s370 + $0x10] sm:$0xff]
        %v416 = vld [vmem:[%s370 + $0x18] sm:$0xff]
        %423 = vrot.lane.b32.xlu0 %v411, 7
        %v424 = vpop.permute.xlu0 %423
        %425 = vrot.lane.b32.xlu0 %v413, 7
        %v426 = vpop.permute.xlu0 %425
        %427 = vrot.lane.b32.xlu0 %v414, 7
        %v428 = vpop.permute.xlu0 %427
        %429 = vrot.lane.b32.xlu0 %v412, 7
        %v430 = vpop.permute.xlu0 %429
        %431 = vrot.lane.b32.xlu0 %v415, 7
        %v432 = vpop.permute.xlu0 %431
        %433 = vrot.lane.b32.xlu0 %v416, 7
        %v434 = vpop.permute.xlu0 %433
        %vm435 = vcmask 56320
        %v436 = vsel %vm435, %v424, %v426
        %v437 = vsel %vm435, %v426, %v428
        %v438 = vsel %vm435, %v430, %v432
        %v439 = vsel %vm435, %v432, %v434
        %v446 = vsub.f32 %v411, %v424
        %v447 = vsub.f32 %v413, %v436
        %v448 = vsub.f32 %v414, %v437
        %v449 = vsub.f32 %v412, %v430
        %v450 = vsub.f32 %v415, %v438
        %v451 = vsub.f32 %v416, %v439
        %458 = vrot.lane.b32.xlu0 %v446, 121
        %v459 = vpop.permute.xlu0 %458
        %460 = vrot.lane.b32.xlu0 %v447, 121
        %v461 = vpop.permute.xlu0 %460
        %462 = vrot.lane.b32.xlu0 %v448, 121
        %v463 = vpop.permute.xlu0 %462
        %464 = vrot.lane.b32.xlu0 %v449, 121
        %v465 = vpop.permute.xlu0 %464
        %466 = vrot.lane.b32.xlu0 %v450, 121
        %v467 = vpop.permute.xlu0 %466
        %468 = vrot.lane.b32.xlu0 %v451, 121
        %v469 = vpop.permute.xlu0 %468
        %vm470 = vcmask 990208
        %v471 = vsel %vm470, %v459, %v461
        %v472 = vsel %vm470, %v461, %v463
        %v473 = vsel %vm470, %v465, %v467
        %v474 = vsel %vm470, %v467, %v469
        %475 = vrot.lane.b32.xlu0 %v446, 114
        %v476 = vpop.permute.xlu0 %475
        %477 = vrot.lane.b32.xlu0 %v447, 114
        %v478 = vpop.permute.xlu0 %477
        %479 = vrot.lane.b32.xlu0 %v448, 114
        %v480 = vpop.permute.xlu0 %479
        %481 = vrot.lane.b32.xlu0 %v449, 114
        %v482 = vpop.permute.xlu0 %481
        %483 = vrot.lane.b32.xlu0 %v450, 114
        %v484 = vpop.permute.xlu0 %483
        %485 = vrot.lane.b32.xlu0 %v451, 114
        %v486 = vpop.permute.xlu0 %485
        %vm487 = vcmask 932864
        %v488 = vsel %vm487, %v476, %v478
        %v489 = vsel %vm487, %v478, %v480
        %v490 = vsel %vm487, %v482, %v484
        %v491 = vsel %vm487, %v484, %v486
        %492 = vrot.lane.b32.xlu0 %v446, 107
        %v493 = vpop.permute.xlu0 %492
        %494 = vrot.lane.b32.xlu0 %v447, 107
        %v495 = vpop.permute.xlu0 %494
        %496 = vrot.lane.b32.xlu0 %v448, 107
        %v497 = vpop.permute.xlu0 %496
        %498 = vrot.lane.b32.xlu0 %v449, 107
        %v499 = vpop.permute.xlu0 %498
        %500 = vrot.lane.b32.xlu0 %v450, 107
        %v501 = vpop.permute.xlu0 %500
        %502 = vrot.lane.b32.xlu0 %v451, 107
        %v503 = vpop.permute.xlu0 %502
        %vm504 = vcmask 875520
        %v505 = vsel %vm504, %v493, %v495
        %v506 = vsel %vm504, %v495, %v497
        %v507 = vsel %vm504, %v499, %v501
        %v508 = vsel %vm504, %v501, %v503
        %509 = vrot.lane.b32.xlu0 %v446, 100
        %v510 = vpop.permute.xlu0 %509
        %511 = vrot.lane.b32.xlu0 %v447, 100
        %v512 = vpop.permute.xlu0 %511
        %513 = vrot.lane.b32.xlu0 %v448, 100
        %v514 = vpop.permute.xlu0 %513
        %515 = vrot.lane.b32.xlu0 %v449, 100
        %v516 = vpop.permute.xlu0 %515
        %517 = vrot.lane.b32.xlu0 %v450, 100
        %v518 = vpop.permute.xlu0 %517
        %519 = vrot.lane.b32.xlu0 %v451, 100
        %v520 = vpop.permute.xlu0 %519
        %vm521 = vcmask 818176
        %v522 = vsel %vm521, %v510, %v512
        %v523 = vsel %vm521, %v512, %v514
        %v524 = vsel %vm521, %v516, %v518
        %v525 = vsel %vm521, %v518, %v520
        %526 = vrot.lane.b32.xlu0 %v446, 93
        %v527 = vpop.permute.xlu0 %526
        %528 = vrot.lane.b32.xlu0 %v447, 93
        %v529 = vpop.permute.xlu0 %528
        %530 = vrot.lane.b32.xlu0 %v448, 93
        %v531 = vpop.permute.xlu0 %530
        %532 = vrot.lane.b32.xlu0 %v449, 93
        %v533 = vpop.permute.xlu0 %532
        %534 = vrot.lane.b32.xlu0 %v450, 93
        %v535 = vpop.permute.xlu0 %534
        %536 = vrot.lane.b32.xlu0 %v451, 93
        %v537 = vpop.permute.xlu0 %536
        %vm538 = vcmask 760832
        %v539 = vsel %vm538, %v527, %v529
        %v540 = vsel %vm538, %v529, %v531
        %v541 = vsel %vm538, %v533, %v535
        %v542 = vsel %vm538, %v535, %v537
        %543 = vrot.lane.b32.xlu0 %v447, 86
        %v544 = vpop.permute.xlu0 %543
        %545 = vrot.lane.b32.xlu0 %v448, 86
        %v546 = vpop.permute.xlu0 %545
        %547 = vrot.lane.b32.xlu0 %v450, 86
        %v548 = vpop.permute.xlu0 %547
        %549 = vrot.lane.b32.xlu0 %v451, 86
        %v550 = vpop.permute.xlu0 %549
        %vm551 = vcmask 703488
        %v552 = vsel %vm551, %v544, %v546
        %v553 = vsel %vm551, %v548, %v550
        %p554 = scmp.eq.s32.totalorder %s26, 0
        %v555 = vld [vmem:[%s2] sm:$0xff]
        %v556 = vld [vmem:[%s2 + $0x8] sm:$0xff]
        %v557 = vld [vmem:[%s2 + $0x10] sm:$0xff]
        %v558 = vld [vmem:[%s2 + $0x18] sm:$0xff]
        %v559 = vld [vmem:[%s2 + $0x20] sm:$0xff]
        %v560 = vld [vmem:[%s2 + $0x28] sm:$0xff]
        %v561 = vld [vmem:[%s2 + $0x30] sm:$0xff]
        %v562 = vld [vmem:[%s2 + $0x38] sm:$0xff]
        %v563 = vld [vmem:[%s2 + $0x40] sm:$0xff]
        %v564 = vld [vmem:[%s2 + $0x48] sm:$0xff]
        %v565 = vld [vmem:[%s2 + $0x50] sm:$0xff]
        %v566 = vld [vmem:[%s2 + $0x58] sm:$0xff]
        %v567 = vld [vmem:[%s2 + $0x60] sm:$0xff]
        %v568 = vld [vmem:[%s2 + $0x68] sm:$0xff]
        %s569 = scalar_select %p554, 1, 0
        %v570 = vstv %s569
        %vm571 = vcmp.eq.s32.totalorder %v570, 1
        %572 = vrot.lane.b32.xlu0 %v446, 42
        %v573 = vpop.permute.xlu0 %572
        %574 = vrot.lane.b32.xlu0 %v447, 42
        %v575 = vpop.permute.xlu0 %574
        %576 = vrot.lane.b32.xlu0 %v449, 42
        %v577 = vpop.permute.xlu0 %576
        %578 = vrot.lane.b32.xlu0 %v450, 42
        %v579 = vpop.permute.xlu0 %578
        %580 = vrot.lane.b32.xlu0 %v471, 42
        %v581 = vpop.permute.xlu0 %580
        %582 = vrot.lane.b32.xlu0 %v472, 42
        %v583 = vpop.permute.xlu0 %582
        %584 = vrot.lane.b32.xlu0 %v473, 42
        %v585 = vpop.permute.xlu0 %584
        %586 = vrot.lane.b32.xlu0 %v474, 42
        %v587 = vpop.permute.xlu0 %586
        %588 = vrot.lane.b32.xlu0 %v488, 42
        %v589 = vpop.permute.xlu0 %588
        %590 = vrot.lane.b32.xlu0 %v489, 42
        %v591 = vpop.permute.xlu0 %590
        %592 = vrot.lane.b32.xlu0 %v490, 42
        %v593 = vpop.permute.xlu0 %592
        %594 = vrot.lane.b32.xlu0 %v491, 42
        %v595 = vpop.permute.xlu0 %594
        %596 = vrot.lane.b32.xlu0 %v505, 42
        %v597 = vpop.permute.xlu0 %596
        %598 = vrot.lane.b32.xlu0 %v506, 42
        %v599 = vpop.permute.xlu0 %598
        %600 = vrot.lane.b32.xlu0 %v507, 42
        %v601 = vpop.permute.xlu0 %600
        %602 = vrot.lane.b32.xlu0 %v508, 42
        %v603 = vpop.permute.xlu0 %602
        %604 = vrot.lane.b32.xlu0 %v522, 42
        %v605 = vpop.permute.xlu0 %604
        %606 = vrot.lane.b32.xlu0 %v523, 42
        %v607 = vpop.permute.xlu0 %606
        %608 = vrot.lane.b32.xlu0 %v524, 42
        %v609 = vpop.permute.xlu0 %608
        %610 = vrot.lane.b32.xlu0 %v525, 42
        %v611 = vpop.permute.xlu0 %610
        %612 = vrot.lane.b32.xlu0 %v539, 42
        %v613 = vpop.permute.xlu0 %612
        %614 = vrot.lane.b32.xlu0 %v540, 42
        %v615 = vpop.permute.xlu0 %614
        %616 = vrot.lane.b32.xlu0 %v541, 42
        %v617 = vpop.permute.xlu0 %616
        %618 = vrot.lane.b32.xlu0 %v542, 42
        %v619 = vpop.permute.xlu0 %618
        %620 = vrot.lane.b32.xlu0 %v544, 42
        %v621 = vpop.permute.xlu0 %620
        %622 = vrot.lane.b32.xlu0 %v552, 42
        %v623 = vpop.permute.xlu0 %622
        %624 = vrot.lane.b32.xlu0 %v548, 42
        %v625 = vpop.permute.xlu0 %624
        %626 = vrot.lane.b32.xlu0 %v553, 42
        %v627 = vpop.permute.xlu0 %626
        %vm628 = vcmask 343040
        %v629 = vsel %vm628, %v573, %v575
        %v630 = vsel %vm628, %v577, %v579
        %v631 = vsel %vm628, %v581, %v583
        %v632 = vsel %vm628, %v585, %v587
        %v633 = vsel %vm628, %v589, %v591
        %v634 = vsel %vm628, %v593, %v595
        %v635 = vsel %vm628, %v597, %v599
        %v636 = vsel %vm628, %v601, %v603
        %v637 = vsel %vm628, %v605, %v607
        %v638 = vsel %vm628, %v609, %v611
        %v639 = vsel %vm628, %v613, %v615
        %v640 = vsel %vm628, %v617, %v619
        %v641 = vsel %vm628, %v621, %v623
        %v642 = vsel %vm628, %v625, %v627
        %v657 = vsel %vm571, %v555, %v629
        %v658 = vsel %vm571, %v556, %v630
        %v659 = vsel %vm571, %v557, %v631
        %v660 = vsel %vm571, %v558, %v632
        %v661 = vsel %vm571, %v559, %v633
        %v662 = vsel %vm571, %v560, %v634
        %v663 = vsel %vm571, %v561, %v635
        %v664 = vsel %vm571, %v562, %v636
        %v665 = vsel %vm571, %v563, %v637
        %v666 = vsel %vm571, %v564, %v638
        %v667 = vsel %vm571, %v565, %v639
        %v668 = vsel %vm571, %v566, %v640
        %v669 = vsel %vm571, %v567, %v641
        %v670 = vsel %vm571, %v568, %v642
        %671 = vrot.lane.b32.xlu0 %v448, 42
        %v672 = vpop.permute.xlu0 %671
        %673 = vrot.lane.b32.xlu0 %v451, 42
        %v674 = vpop.permute.xlu0 %673
        %675 = vrot.lane.b32.xlu0 %v463, 42
        %v676 = vpop.permute.xlu0 %675
        %677 = vrot.lane.b32.xlu0 %v469, 42
        %v678 = vpop.permute.xlu0 %677
        %679 = vrot.lane.b32.xlu0 %v480, 42
        %v680 = vpop.permute.xlu0 %679
        %681 = vrot.lane.b32.xlu0 %v486, 42
        %v682 = vpop.permute.xlu0 %681
        %683 = vrot.lane.b32.xlu0 %v497, 42
        %v684 = vpop.permute.xlu0 %683
        %685 = vrot.lane.b32.xlu0 %v503, 42
        %v686 = vpop.permute.xlu0 %685
        %687 = vrot.lane.b32.xlu0 %v514, 42
        %v688 = vpop.permute.xlu0 %687
        %689 = vrot.lane.b32.xlu0 %v520, 42
        %v690 = vpop.permute.xlu0 %689
        %691 = vrot.lane.b32.xlu0 %v531, 42
        %v692 = vpop.permute.xlu0 %691
        %693 = vrot.lane.b32.xlu0 %v537, 42
        %v694 = vpop.permute.xlu0 %693
        %695 = vrot.lane.b32.xlu0 %v546, 42
        %v696 = vpop.permute.xlu0 %695
        %697 = vrot.lane.b32.xlu0 %v550, 42
        %v698 = vpop.permute.xlu0 %697
        %v699 = vsel %vm628, %v575, %v672
        %v700 = vsel %vm628, %v579, %v674
        %v701 = vsel %vm628, %v583, %v676
        %v702 = vsel %vm628, %v587, %v678
        %v703 = vsel %vm628, %v591, %v680
        %v704 = vsel %vm628, %v595, %v682
        %v705 = vsel %vm628, %v599, %v684
        %v706 = vsel %vm628, %v603, %v686
        %v707 = vsel %vm628, %v607, %v688
        %v708 = vsel %vm628, %v611, %v690
        %v709 = vsel %vm628, %v615, %v692
        %v710 = vsel %vm628, %v619, %v694
        %v711 = vsel %vm628, %v623, %v696
        %v712 = vsel %vm628, %v627, %v698
        %v727 = vld [vmem:[%s3] sm:$0xff]
        %v728 = vld [vmem:[%s3 + $0x8] sm:$0xff]
        %v729 = vld [vmem:[%s3 + $0x10] sm:$0xff]
        %v730 = vld [vmem:[%s3 + $0x18] sm:$0xff]
        %v731 = vld [vmem:[%s4] sm:$0xff]
        %v732 = vld [vmem:[%s4 + $0x8] sm:$0xff]
        %v733 = vld [vmem:[%s4 + $0x10] sm:$0xff]
        %v734 = vld [vmem:[%s4 + $0x18] sm:$0xff]
        %736 = vset.pattern.permute.xlu0 0
        %737 = vperm.xlu0 %736, %v731
        %v738 = vpop.permute.xlu0 %737
        %741 = vset.pattern.permute.xlu0 0
        %742 = vperm.xlu0 %741, %v732
        %v743 = vpop.permute.xlu0 %742
        %746 = vset.pattern.permute.xlu0 0
        %747 = vperm.xlu0 %746, %v733
        %v748 = vpop.permute.xlu0 %747
        %751 = vset.pattern.permute.xlu0 0
        %752 = vperm.xlu0 %751, %v734
        %v753 = vpop.permute.xlu0 %752
        %vm755 = vcmask 916480
        %v757 = vsel %vm755, %v727, 0
        %v760 = vsel %vm755, %v728, 0
        %v763 = vsel %vm755, %v729, 0
        %v766 = vsel %vm755, %v730, 0
        %768 = vmatprep.subr.mxu0 %v699
        %769 = vmatpush1.msra.mxu0 %v657
        %770 = vmatprep.subr.mxu0 %v700
        %771 = vmatpush1.msra.mxu0 %v658
        %772 = vmatprep.subr.mxu0 %v701
        %773 = vmatpush1.msra.mxu0 %v659
        %774 = vmatprep.subr.mxu0 %v702
        %775 = vmatpush1.msra.mxu0 %v660
        %776 = vmatprep.subr.mxu0 %v703
        %777 = vmatpush1.msra.mxu0 %v661
        %778 = vmatprep.subr.mxu0 %v704
        %779 = vmatpush1.msra.mxu0 %v662
        %780 = vmatprep.subr.mxu0 %v705
        %781 = vmatpush1.msra.mxu0 %v663
        %782 = vmatprep.subr.mxu0 %v706
        %783 = vmatpush1.msra.mxu0 %v664
        %784 = vmatprep.subr.mxu0 %v707
        %785 = vmatpush1.msra.mxu0 %v665
        %786 = vmatprep.subr.mxu0 %v708
        %787 = vmatpush1.msra.mxu0 %v666
        %788 = vmatprep.subr.mxu0 %v709
        %789 = vmatpush1.msra.mxu0 %v667
        %790 = vmatprep.subr.mxu0 %v710
        %791 = vmatpush1.msra.mxu0 %v668
        %792 = vmatprep.subr.mxu0 %v711
        %793 = vmatpush1.msra.mxu0 %v669
        %794 = vmatprep.subr.mxu0 %v712
        %795 = vmatpush1.msra.mxu0 %v670
        %796 = vmatprep.subr.mxu0 0.0
        %797 = vmatpush1.msra.mxu0 0.0
        %798 = vmatprep.subr.mxu0 0.0
        %799 = vmatpush1.msra.mxu0 0.0
        %800 = vmatprep.subr.mxu0 0.0
        %801 = vmatpush1.msra.mxu0 0.0
        %802 = vmatprep.subr.mxu0 0.0
        %803 = vmatpush1.msra.mxu0 0.0
        %804 = vmatprep.subr.mxu0 0.0
        %805 = vmatpush1.msra.mxu0 0.0
        %806 = vmatprep.subr.mxu0 0.0
        %807 = vmatpush1.msra.mxu0 0.0
        %808 = vmatprep.subr.mxu0 0.0
        %809 = vmatpush1.msra.mxu0 0.0
        %810 = vmatprep.subr.mxu0 0.0
        %811 = vmatpush1.msra.mxu0 0.0
        %812 = vmatprep.subr.mxu0 0.0
        %813 = vmatpush1.msra.mxu0 0.0
        %814 = vmatprep.subr.mxu0 0.0
        %815 = vmatpush1.msra.mxu0 0.0
        %816 = vmatprep.subr.mxu0 0.0
        %817 = vmatpush1.msra.mxu0 0.0
        %818 = vmatprep.subr.mxu0 0.0
        %819 = vmatpush1.msra.mxu0 0.0
        %820 = vmatprep.subr.mxu0 0.0
        %821 = vmatpush1.msra.mxu0 0.0
        %822 = vmatprep.subr.mxu0 0.0
        %823 = vmatpush1.msra.mxu0 0.0
        %824 = vmatprep.subr.mxu0 0.0
        %825 = vmatpush1.msra.mxu0 0.0
        %826 = vmatprep.subr.mxu0 0.0
        %827 = vmatpush1.msra.mxu0 0.0
        %828 = vmatprep.subr.mxu0 0.0
        %829 = vmatpush1.msra.mxu0 0.0
        %830 = vmatprep.subr.mxu0 0.0
        %831 = vmatpush1.msra.mxu0 0.0
        %832 = vmatprep.mubr.f32.mxu0 0.0
        %833 = vmatmul.mubr.f32.gmra.mrb[0].mxu0 %v757
        %v834 = vpop.f32.mrb[0].mxu0
        %v835 = vadd.f32 %v738, %v834
        %v836 = vpop.f32.mrb[0].mxu0
        %v837 = vadd.f32 %v738, %v836
        %838 = vmatprep.mubr.f32.mxu0 0.0
        %839 = vmatmul.mubr.f32.gmra.mrb[0].mxu0 %v760
        %v840 = vpop.f32.mrb[0].mxu0
        %v841 = vadd.f32 %v743, %v840
        %v842 = vpop.f32.mrb[0].mxu0
        %v843 = vadd.f32 %v743, %v842
        %844 = vmatprep.mubr.f32.mxu0 0.0
        %845 = vmatmul.mubr.f32.gmra.mrb[0].mxu0 %v763
        %v846 = vpop.f32.mrb[0].mxu0
        %v847 = vadd.f32 %v748, %v846
        %v848 = vpop.f32.mrb[0].mxu0
        %v849 = vadd.f32 %v748, %v848
        %850 = vmatprep.mubr.f32.mxu0 0.0
        %851 = vmatmul.mubr.f32.gmra.mrb[0].mxu0 %v766
        %v852 = vpop.f32.mrb[0].mxu0
        %v853 = vadd.f32 %v753, %v852
        %v854 = vpop.f32.mrb[0].mxu0
        %v855 = vadd.f32 %v753, %v854
        %856 = vdwg.mxu0
        %v857 = vmax.f32 %v835, 0.0
        %v858 = vmax.f32 %v837, 0.0
        %v859 = vmax.f32 %v841, 0.0
        %v860 = vmax.f32 %v843, 0.0
        %v861 = vmax.f32 %v847, 0.0
        %v862 = vmax.f32 %v849, 0.0
        %v863 = vmax.f32 %v853, 0.0
        %v864 = vmax.f32 %v855, 0.0
        %v865 = vld [vmem:[%s5] sm:$0xff]
        %v866 = vld [vmem:[%s5 + $0x8] sm:$0xff]
        %v867 = vld [vmem:[%s5 + $0x10] sm:$0xff]
        %v868 = vld [vmem:[%s5 + $0x18] sm:$0xff]
        %v869 = vld [vmem:[%s5 + $0x20] sm:$0xff]
        %v870 = vld [vmem:[%s5 + $0x28] sm:$0xff]
        %v871 = vld [vmem:[%s6] sm:$0xff]
        %v872 = vld [vmem:[%s6 + $0x8] sm:$0xff]
        %v873 = vld [vmem:[%s6 + $0x10] sm:$0xff]
        %v874 = vld [vmem:[%s6 + $0x18] sm:$0xff]
        %v875 = vld [vmem:[%s6 + $0x20] sm:$0xff]
        %v876 = vld [vmem:[%s6 + $0x28] sm:$0xff]
        %878 = vset.pattern.permute.xlu0 0
        %879 = vperm.xlu0 %878, %v871
        %v880 = vpop.permute.xlu0 %879
        %883 = vset.pattern.permute.xlu0 0
        %884 = vperm.xlu0 %883, %v872
        %v885 = vpop.permute.xlu0 %884
        %888 = vset.pattern.permute.xlu0 0
        %889 = vperm.xlu0 %888, %v873
        %v890 = vpop.permute.xlu0 %889
        %893 = vset.pattern.permute.xlu0 0
        %894 = vperm.xlu0 %893, %v874
        %v895 = vpop.permute.xlu0 %894
        %898 = vset.pattern.permute.xlu0 0
        %899 = vperm.xlu0 %898, %v875
        %v900 = vpop.permute.xlu0 %899
        %903 = vset.pattern.permute.xlu0 0
        %904 = vperm.xlu0 %903, %v876
        %v905 = vpop.permute.xlu0 %904
        %vm907 = vcmask 261120
        %v909 = vsel %vm907, %v865, 0
        %v912 = vsel %vm907, %v866, 0
        %v915 = vsel %vm907, %v867, 0
        %v918 = vsel %vm907, %v868, 0
        %v921 = vsel %vm907, %v869, 0
        %v924 = vsel %vm907, %v870, 0
        %926 = vmatprep.subr.mxu0 %v858
        %927 = vmatpush1.msra.mxu0 %v857
        %928 = vmatprep.subr.mxu0 %v860
        %929 = vmatpush1.msra.mxu0 %v859
        %930 = vmatprep.subr.mxu0 %v862
        %931 = vmatpush1.msra.mxu0 %v861
        %932 = vmatprep.subr.mxu0 %v864
        %933 = vmatpush1.msra.mxu0 %v863
        %934 = vmatprep.subr.mxu0 0.0
        %935 = vmatpush1.msra.mxu0 0.0
        %936 = vmatprep.subr.mxu0 0.0
        %937 = vmatpush1.msra.mxu0 0.0
        %938 = vmatprep.subr.mxu0 0.0
        %939 = vmatpush1.msra.mxu0 0.0
        %940 = vmatprep.subr.mxu0 0.0
        %941 = vmatpush1.msra.mxu0 0.0
        %942 = vmatprep.subr.mxu0 0.0
        %943 = vmatpush1.msra.mxu0 0.0
        %944 = vmatprep.subr.mxu0 0.0
        %945 = vmatpush1.msra.mxu0 0.0
        %946 = vmatprep.subr.mxu0 0.0
        %947 = vmatpush1.msra.mxu0 0.0
        %948 = vmatprep.subr.mxu0 0.0
        %949 = vmatpush1.msra.mxu0 0.0
        %950 = vmatprep.subr.mxu0 0.0
        %951 = vmatpush1.msra.mxu0 0.0
        %952 = vmatprep.subr.mxu0 0.0
        %953 = vmatpush1.msra.mxu0 0.0
        %954 = vmatprep.subr.mxu0 0.0
        %955 = vmatpush1.msra.mxu0 0.0
        %956 = vmatprep.subr.mxu0 0.0
        %957 = vmatpush1.msra.mxu0 0.0
        %958 = vmatprep.subr.mxu0 0.0
        %959 = vmatpush1.msra.mxu0 0.0
        %960 = vmatprep.subr.mxu0 0.0
        %961 = vmatpush1.msra.mxu0 0.0
        %962 = vmatprep.subr.mxu0 0.0
        %963 = vmatpush1.msra.mxu0 0.0
        %964 = vmatprep.subr.mxu0 0.0
        %965 = vmatpush1.msra.mxu0 0.0
        %966 = vmatprep.subr.mxu0 0.0
        %967 = vmatpush1.msra.mxu0 0.0
        %968 = vmatprep.subr.mxu0 0.0
        %969 = vmatpush1.msra.mxu0 0.0
        %970 = vmatprep.subr.mxu0 0.0
        %971 = vmatpush1.msra.mxu0 0.0
        %972 = vmatprep.subr.mxu0 0.0
        %973 = vmatpush1.msra.mxu0 0.0
        %974 = vmatprep.subr.mxu0 0.0
        %975 = vmatpush1.msra.mxu0 0.0
        %976 = vmatprep.subr.mxu0 0.0
        %977 = vmatpush1.msra.mxu0 0.0
        %978 = vmatprep.subr.mxu0 0.0
        %979 = vmatpush1.msra.mxu0 0.0
        %980 = vmatprep.subr.mxu0 0.0
        %981 = vmatpush1.msra.mxu0 0.0
        %982 = vmatprep.subr.mxu0 0.0
        %983 = vmatpush1.msra.mxu0 0.0
        %984 = vmatprep.subr.mxu0 0.0
        %985 = vmatpush1.msra.mxu0 0.0
        %986 = vmatprep.subr.mxu0 0.0
        %987 = vmatpush1.msra.mxu0 0.0
        %988 = vmatprep.subr.mxu0 0.0
        %989 = vmatpush1.msra.mxu0 0.0
        %990 = vmatprep.mubr.f32.mxu0 0.0
        %991 = vmatmul.mubr.f32.gmra.mrb[0].mxu0 %v909
        %v992 = vpop.f32.mrb[0].mxu0
        %v993 = vadd.f32 %v880, %v992
        %v994 = vpop.f32.mrb[0].mxu0
        %v995 = vadd.f32 %v880, %v994
        %996 = vmatprep.mubr.f32.mxu0 0.0
        %997 = vmatmul.mubr.f32.gmra.mrb[0].mxu0 %v912
        %v998 = vpop.f32.mrb[0].mxu0
        %v999 = vadd.f32 %v885, %v998
        %v1000 = vpop.f32.mrb[0].mxu0
        %v1001 = vadd.f32 %v885, %v1000
        %1002 = vmatprep.mubr.f32.mxu0 0.0
        %1003 = vmatmul.mubr.f32.gmra.mrb[0].mxu0 %v915
        %v1004 = vpop.f32.mrb[0].mxu0
        %v1005 = vadd.f32 %v890, %v1004
        %v1006 = vpop.f32.mrb[0].mxu0
        %v1007 = vadd.f32 %v890, %v1006
        %1008 = vmatprep.mubr.f32.mxu0 0.0
        %1009 = vmatmul.mubr.f32.gmra.mrb[0].mxu0 %v918
        %v1010 = vpop.f32.mrb[0].mxu0
        %v1011 = vadd.f32 %v895, %v1010
        %v1012 = vpop.f32.mrb[0].mxu0
        %v1013 = vadd.f32 %v895, %v1012
        %1014 = vmatprep.mubr.f32.mxu0 0.0
        %1015 = vmatmul.mubr.f32.gmra.mrb[0].mxu0 %v921
        %v1016 = vpop.f32.mrb[0].mxu0
        %v1017 = vadd.f32 %v900, %v1016
        %v1018 = vpop.f32.mrb[0].mxu0
        %v1019 = vadd.f32 %v900, %v1018
        %1020 = vmatprep.mubr.f32.mxu0 0.0
        %1021 = vmatmul.mubr.f32.gmra.mrb[0].mxu0 %v924
        %v1022 = vpop.f32.mrb[0].mxu0
        %v1023 = vadd.f32 %v905, %v1022
        %v1024 = vpop.f32.mrb[0].mxu0
        %v1025 = vadd.f32 %v905, %v1024
        %1026 = vdwg.mxu0
        %v1027 = vmax.f32 %v993, 0.0
        %v1028 = vmax.f32 %v995, 0.0
        %v1029 = vmax.f32 %v999, 0.0
        %v1030 = vmax.f32 %v1001, 0.0
        %v1031 = vmax.f32 %v1005, 0.0
        %v1032 = vmax.f32 %v1007, 0.0
        %v1033 = vmax.f32 %v1011, 0.0
        %v1034 = vmax.f32 %v1013, 0.0
        %v1035 = vmax.f32 %v1017, 0.0
        %v1036 = vmax.f32 %v1019, 0.0
        %v1037 = vmax.f32 %v1023, 0.0
        %v1038 = vmax.f32 %v1025, 0.0
        %v1039 = vld [vmem:[%s7] sm:$0x3]
        %v1040 = vld [vmem:[%s8] sm:$0x3]
        %1042 = vset.pattern.permute.xlu0 0
        %1043 = vperm.xlu0 %1042, %v1040
        %v1044 = vpop.permute.xlu0 %1043
        %vm1046 = vcmask 392192
        %v1048 = vsel %vm1046, %v1039, 0
        %1050 = vmatprep.subr.mxu0 %v1028
        %1051 = vmatpush1.msra.mxu0 %v1027
        %1052 = vmatprep.subr.mxu0 %v1030
        %1053 = vmatpush1.msra.mxu0 %v1029
        %1054 = vmatprep.subr.mxu0 %v1032
        %1055 = vmatpush1.msra.mxu0 %v1031
        %1056 = vmatprep.subr.mxu0 %v1034
        %1057 = vmatpush1.msra.mxu0 %v1033
        %1058 = vmatprep.subr.mxu0 %v1036
        %1059 = vmatpush1.msra.mxu0 %v1035
        %1060 = vmatprep.subr.mxu0 %v1038
        %1061 = vmatpush1.msra.mxu0 %v1037
        %1062 = vmatprep.subr.mxu0 0.0
        %1063 = vmatpush1.msra.mxu0 0.0
        %1064 = vmatprep.subr.mxu0 0.0
        %1065 = vmatpush1.msra.mxu0 0.0
        %1066 = vmatprep.subr.mxu0 0.0
        %1067 = vmatpush1.msra.mxu0 0.0
        %1068 = vmatprep.subr.mxu0 0.0
        %1069 = vmatpush1.msra.mxu0 0.0
        %1070 = vmatprep.subr.mxu0 0.0
        %1071 = vmatpush1.msra.mxu0 0.0
        %1072 = vmatprep.subr.mxu0 0.0
        %1073 = vmatpush1.msra.mxu0 0.0
        %1074 = vmatprep.subr.mxu0 0.0
        %1075 = vmatpush1.msra.mxu0 0.0
        %1076 = vmatprep.subr.mxu0 0.0
        %1077 = vmatpush1.msra.mxu0 0.0
        %1078 = vmatprep.subr.mxu0 0.0
        %1079 = vmatpush1.msra.mxu0 0.0
        %1080 = vmatprep.subr.mxu0 0.0
        %1081 = vmatpush1.msra.mxu0 0.0
        %1082 = vmatprep.subr.mxu0 0.0
        %1083 = vmatpush1.msra.mxu0 0.0
        %1084 = vmatprep.subr.mxu0 0.0
        %1085 = vmatpush1.msra.mxu0 0.0
        %1086 = vmatprep.subr.mxu0 0.0
        %1087 = vmatpush1.msra.mxu0 0.0
        %1088 = vmatprep.subr.mxu0 0.0
        %1089 = vmatpush1.msra.mxu0 0.0
        %1090 = vmatprep.subr.mxu0 0.0
        %1091 = vmatpush1.msra.mxu0 0.0
        %1092 = vmatprep.subr.mxu0 0.0
        %1093 = vmatpush1.msra.mxu0 0.0
        %1094 = vmatprep.subr.mxu0 0.0
        %1095 = vmatpush1.msra.mxu0 0.0
        %1096 = vmatprep.subr.mxu0 0.0
        %1097 = vmatpush1.msra.mxu0 0.0
        %1098 = vmatprep.subr.mxu0 0.0
        %1099 = vmatpush1.msra.mxu0 0.0
        %1100 = vmatprep.subr.mxu0 0.0
        %1101 = vmatpush1.msra.mxu0 0.0
        %1102 = vmatprep.subr.mxu0 0.0
        %1103 = vmatpush1.msra.mxu0 0.0
        %1104 = vmatprep.subr.mxu0 0.0
        %1105 = vmatpush1.msra.mxu0 0.0
        %1106 = vmatprep.subr.mxu0 0.0
        %1107 = vmatpush1.msra.mxu0 0.0
        %1108 = vmatprep.subr.mxu0 0.0
        %1109 = vmatpush1.msra.mxu0 0.0
        %1110 = vmatprep.subr.mxu0 0.0
        %1111 = vmatpush1.msra.mxu0 0.0
        %1112 = vmatprep.subr.mxu0 0.0
        %1113 = vmatpush1.msra.mxu0 0.0
        %1114 = vmatprep.mubr.f32.mxu0 0.0
        %1115 = vmatmul.mubr.f32.gmra.mrb[0].mxu0 %v1048
        %v1116 = vpop.f32.mrb[0].mxu0
        %v1117 = vadd.f32 %v1044, %v1116
        %v1118 = vpop.f32.mrb[0].mxu0
        %v1119 = vadd.f32 %v1044, %v1118
        %1120 = vdwg.mxu0
        %v1123 = vcombine.low %v1117, %v1119
        %v1125 = vunpack.c.l.s4 1983009808
        %v1126 = vunpack.c.0.s8 %v1125
        %v1127 = vlaneseq
        %v1128 = vshrl.u32 %v1127, 7
        %v1129 = vsub.s32 %v1126, %v1128
        %v1130 = vrot.slane %v1123, %v1129
        %1132 = vst [vmem:[%s408] sm:$0xf] %v1130
        %s1133 = sand.u32 %s233, 1
        %s1134 = scalar_lea.sflag [#allocation5], %s1133
        %s1135 = sand.u32 %s233, 1
        %s1136 = smul.addr %s1135, 4
        %s1137 = scalar_lea.vmem [#allocation6], %s1136
        // Predicated region
        $region99: #{tpu_custom_call.1} parent=89 // pred_check
          %p1138 = pneg %p243
        $region100: #{tpu_custom_call.1} parent=89 // pred_check_branch
          %1140 = sbr.rel (%p1138) target = $region102
        $region101: #{tpu_custom_call.1} parent=89 // pred_region
          %s1141 = smul.u32 2, %s26
          %s1143 = ssub.s32 64, 64
          %1144 = vsyncadd %s1134, %s1143
          %s1145 = smul.addr %s1141, 32
          %s1146 = scalar_lea.hbm %s9, %s1145
          %s1148 = sshll.u32 %s1137, 4
          %s1149 = int_to_ptr.vmem [resolvable:$true] %s1148
          %1151 = dma.vmem_to_hbm [thread:$0]  %s1149, 64, %s1146, %s1134
        $region102: #{tpu_custom_call.1} parent=89 // pred_fallthru
          _
      $region90: #{tpu_custom_call.1} parent=5 // pred_fallthru
        _
      %p1152 = scmp.le.s32.totalorder 2, %s21
      // Predicated region
      $region103: #{tpu_custom_call.1} parent=5 // pred_check
        %p1153 = pneg %p1152
      $region104: #{tpu_custom_call.1} parent=5 // pred_check_branch
        %1155 = sbr.rel (%p1153) target = $region106
      $region105: #{tpu_custom_call.1} parent=5 // pred_region
        %s1156 = ssub.s32 %s21, 2
        // Predicated region
        $region107: #{tpu_custom_call.1} parent=105 // pred_check
          %p1157 = pneg %p249
        $region108: #{tpu_custom_call.1} parent=105 // pred_check_branch
          %1159 = sbr.rel (%p1157) target = $region110
        $region109: #{tpu_custom_call.1} parent=105 // pred_region
          %s1160 = sand.u32 %s234, 1
          %s1161 = scalar_lea.sflag [#allocation5], %s1160
          %s1162 = sand.u32 %s234, 1
          %s1163 = smul.addr %s1162, 4
          %s1164 = scalar_lea.vmem [#allocation6], %s1163
          %1165 = dma.done %s1161, 64
        $region110: #{tpu_custom_call.1} parent=105 // pred_fallthru
          _
      $region106: #{tpu_custom_call.1} parent=5 // pred_fallthru
        _
    $region6: #{tpu_custom_call.1} parent=1 // loop_footer
      %s25 = sadd.s32 1, %s21
    $region7: #{tpu_custom_call.1} parent=1 // loop_footer_branch
      %20 = sbr.rel target = $region3
    $region8: #{tpu_custom_call.1} parent=1 // loop_exit
      _
    %1166 = vsyncpa [#allocation4], 1
    %s1167 = scalar_lea.sflag [#allocation4], 1
    %1168 = vsyncpa %s1167, 1
    %1169 = vsyncpa [#allocation5], 1
    %s1170 = scalar_lea.sflag [#allocation5], 1
    %1171 = vsyncpa %s1170, 1

</llo_original>
